<compile_context>
chip_gen: v7x
topology: tpu7x:2x2x1
jax: 0.10.0
libtpu: 0.0.40
codegen_flags: <defaults>
</compile_context>

<pallas_src>
import jax
import jax.numpy as jnp
from jax import lax
from jax.experimental import pallas as pl
from jax.experimental.pallas import tpu as pltpu


def _round_up(x, m):
    return ((x + m - 1) // m) * m


def value_net_kernel(x_ref, w1_ref, b1_ref, w2_ref, b2_ref, o_ref):
    # x:  [TILE_B, S]   (f32 or bf16, streamed per grid step)
    # w1: [S, Hp]       (same dtype as x, VMEM-resident)
    # b1: [1, Hp] f32,  w2: [8, Hp] f32 (row 0 = real weights), b2: [1, 1] f32
    # o:  [1, TILE_B] f32 (lane-dense along batch)
    h = jnp.dot(x_ref[...], w1_ref[...], preferred_element_type=jnp.float32)
    h = jnp.maximum(h + b1_ref[...], 0.0)            # bias + ReLU (f32, VPU)

    # Layer 2 on the MXU: contract hidden axis of w2 (8, Hp) against hidden
    # axis of h (TILE_B, Hp) -> (8, TILE_B). Only sublane 0 is meaningful
    # (rows 1..7 of w2 are zero); the result is lane-dense along batch.
    v = lax.dot_general(
        w2_ref[...], h,
        dimension_numbers=(((1,), (1,)), ((), ())),
        preferred_element_type=jnp.float32)

    o_ref[...] = (v[0:1, :] + b2_ref[...]).astype(o_ref.dtype)


def value_net_forward(state, w1, b1, w2, b2, *, tile_b_max=8192):
    """Fused ValueNet forward. state: [B, S] -> returns [B] (float32)."""
    B, S = state.shape
    H = w1.shape[1]

    # --- Parameter prep (tiny, done once per call, plain JAX) ---------------
    # Stream the caller's dtype (bf16 only if the caller already made it bf16;
    # do NOT add a wrapper-side cast pass over the state).
    x_dtype = jnp.bfloat16 if state.dtype == jnp.bfloat16 else jnp.float32
    x = state if state.dtype == x_dtype else state.astype(x_dtype)

    w1_m = jnp.asarray(w1, x_dtype)
    b1_row = jnp.asarray(b1, jnp.float32).reshape(1, H)
    w2_row = jnp.asarray(w2, jnp.float32).reshape(1, H)     # (H,1) -> (1,H)
    b2_s = jnp.asarray(b2, jnp.float32).reshape(1, 1)

    Hp = _round_up(H, 128)                                   # lane-pack hidden
    if Hp != H:
        w1_m = jnp.pad(w1_m, ((0, 0), (0, Hp - H)))          # zeros => exact math
        b1_row = jnp.pad(b1_row, ((0, 0), (0, Hp - H)))
        w2_row = jnp.pad(w2_row, ((0, 0), (0, Hp - H)))
    # (8, Hp) MXU operand: real w2 in sublane 0, zeros in sublanes 1..7.
    w2_blk = jnp.pad(w2_row, ((0, 7), (0, 0)))

    # --- Batch tiling (no wrapper pad; ragged last block handled by Pallas) --
    # >= 2 tiles when possible so both v7x TensorCores get work; cap by a
    # VMEM-aware max (the (TILE_B, S) block lane-pads S->128, ~8x footprint).
    tile_b = max(128, min(tile_b_max, _round_up(pl.cdiv(B, 2), 128)))
    num_tiles = pl.cdiv(B, tile_b)

    x_item = jnp.dtype(x_dtype).itemsize
    cost = pl.CostEstimate(
        flops=2 * B * Hp * S + 2 * B * Hp * 8,
        transcendentals=0,
        bytes_accessed=(B * S * x_item            # streamed state
                        + S * Hp * x_item         # w1 (once)
                        + (9 * Hp + 1) * 4        # b1, w2 block, b2
                        + B * 4),                 # output
    )

    out = pl.pallas_call(
        value_net_kernel,
        out_shape=jax.ShapeDtypeStruct((1, B), jnp.float32),
        grid=(num_tiles,),
        in_specs=[
            pl.BlockSpec((tile_b, S), lambda i: (i, 0)),   # state streams per tile
            pl.BlockSpec((S, Hp), lambda i: (0, 0)),       # w1 resident
            pl.BlockSpec((1, Hp), lambda i: (0, 0)),       # b1 resident
            pl.BlockSpec((8, Hp), lambda i: (0, 0)),       # w2 block resident
            pl.BlockSpec((1, 1), lambda i: (0, 0)),        # b2 resident
        ],
        out_specs=pl.BlockSpec((1, tile_b), lambda i: (0, i)),  # lane-dense out
        compiler_params=pltpu.CompilerParams(
            dimension_semantics=("parallel",),
            vmem_limit_bytes=32 * 1024 * 1024),
        cost_estimate=cost,
    )(x, w1_m, b1_row, w2_blk, b2_s)

    return out[0, :B]                                      # squeeze(-1) semantics


def init_value_net_params(key, state_dim, hidden=64):
    """Deterministic synthetic init (shapes match nn.Linear, transposed)."""
    k1, k2, k3, k4 = jax.random.split(key, 4)
    s1 = 1.0 / jnp.sqrt(jnp.float32(state_dim))
    s2 = 1.0 / jnp.sqrt(jnp.float32(hidden))
    w1 = jax.random.uniform(k1, (state_dim, hidden), jnp.float32, -s1, s1)
    b1 = jax.random.uniform(k2, (1, hidden), jnp.float32, -s1, s1)
    w2 = jax.random.uniform(k3, (hidden, 1), jnp.float32, -s2, s2)
    b2 = jax.random.uniform(k4, (1, 1), jnp.float32, -s2, s2)
    return w1, b1, w2, b2


def _reference(state, w1, b1, w2, b2):
    h = jnp.maximum(state @ w1 + b1.reshape(1, -1), 0.0)
    return (h @ w2.reshape(-1, 1) + b2.reshape(1, 1))[:, 0]


if __name__ == "__main__":
    key = jax.random.PRNGKey(0)
    k_x, k_x2, k_p = jax.random.split(key, 3)

    state_dim, hidden = 16, 64
    w1, b1, w2, b2 = init_value_net_params(k_p, state_dim, hidden)

    # Small batch: single (ragged) tile, exact f32 path.
    state = jax.random.normal(k_x, (8, state_dim), jnp.float32)
    out = jax.block_until_ready(value_net_forward(state, w1, b1, w2, b2))
    ref = _reference(state, w1, b1, w2, b2)
    assert out.shape == (8,)
    assert jnp.allclose(out, ref, atol=1e-4, rtol=1e-4)

    # Multi-tile + ragged last block (no wrapper pad): 300 rows, 128-row tiles
    # -> 3 grid steps, last block only 44 valid rows.
    state2 = jax.random.normal(k_x2, (300, state_dim), jnp.float32)
    out2 = jax.block_until_ready(
        value_net_forward(state2, w1, b1, w2, b2, tile_b_max=128))
    ref2 = _reference(state2, w1, b1, w2, b2)
    assert out2.shape == (300,)
    assert jnp.allclose(out2, ref2, atol=1e-4, rtol=1e-4)

    # Caller-provided bf16 state (bandwidth path); accumulation stays f32.
    out3 = jax.block_until_ready(
        value_net_forward(state2.astype(jnp.bfloat16), w1, b1, w2, b2,
                          tile_b_max=128))
    assert jnp.allclose(out3, ref2, atol=5e-2, rtol=5e-2)

    print("KERNEL_OK")
</pallas_src>

<mosaic_0001>
module attributes {stable_mosaic.version = 11 : i64} {
  func.func @value_net_kernel(%arg0: i32, %arg1: memref<128x16xf32, #tpu.memory_space<vmem>>, %arg2: memref<16x128xf32, #tpu.memory_space<vmem>>, %arg3: memref<1x128xf32, #tpu.memory_space<vmem>>, %arg4: memref<8x128xf32, #tpu.memory_space<vmem>>, %arg5: memref<1x1xf32, #tpu.memory_space<vmem>>, %arg6: memref<1x128xf32, #tpu.memory_space<vmem>>) attributes {dimension_semantics = [#tpu.dimension_semantics<parallel>], iteration_bounds = array<i64: 1>, scalar_prefetch = 0 : i64, scratch_operands = 0 : i64, tpu.core_type = #tpu.core_type<tc>, window_params = [{transform_indices = @transform_0, window_bounds = array<i64: 128, 16>}, {pipeline_mode = #tpu.pipeline_mode<synchronous>, transform_indices = @transform_1, window_bounds = array<i64: 16, 128>}, {pipeline_mode = #tpu.pipeline_mode<synchronous>, transform_indices = @transform_2, window_bounds = array<i64: 1, 128>}, {pipeline_mode = #tpu.pipeline_mode<synchronous>, transform_indices = @transform_3, window_bounds = array<i64: 8, 128>}, {pipeline_mode = #tpu.pipeline_mode<synchronous>, transform_indices = @transform_4, window_bounds = array<i64: 1, 1>}, {transform_indices = @transform_5, window_bounds = array<i64: 1, 128>}]} {
    %c0 = arith.constant 0 : index
    %c0_0 = arith.constant 0 : index
    %0 = vector.load %arg1[%c0, %c0_0] : memref<128x16xf32, #tpu.memory_space<vmem>>, vector<128x16xf32>
    %c0_1 = arith.constant 0 : index
    %c0_2 = arith.constant 0 : index
    %1 = vector.load %arg2[%c0_1, %c0_2] : memref<16x128xf32, #tpu.memory_space<vmem>>, vector<16x128xf32>
    %cst = arith.constant dense<0.000000e+00> : vector<128x128xf32>
    %2 = tpu.matmul %0, %1, %cst {dimension_numbers = #tpu.dot_dimension_numbers<[1], [0], [0], [1], [0, 0, 1, 1], [], []>} : vector<128x16xf32>, vector<16x128xf32>, vector<128x128xf32> -> vector<128x128xf32>
    %c0_3 = arith.constant 0 : index
    %c0_4 = arith.constant 0 : index
    %3 = vector.load %arg3[%c0_3, %c0_4] : memref<1x128xf32, #tpu.memory_space<vmem>>, vector<1x128xf32>
    %4 = vector.broadcast %3 : vector<1x128xf32> to vector<128x128xf32>
    %5 = arith.addf %2, %4 : vector<128x128xf32>
    %cst_5 = arith.constant 0.000000e+00 : f32
    %6 = vector.broadcast %cst_5 : f32 to vector<128x128xf32>
    %7 = arith.maximumf %5, %6 : vector<128x128xf32>
    %c0_6 = arith.constant 0 : index
    %c0_7 = arith.constant 0 : index
    %8 = vector.load %arg4[%c0_6, %c0_7] : memref<8x128xf32, #tpu.memory_space<vmem>>, vector<8x128xf32>
    %cst_8 = arith.constant dense<0.000000e+00> : vector<8x128xf32>
    %9 = tpu.matmul %8, %7, %cst_8 {dimension_numbers = #tpu.dot_dimension_numbers<[1], [1], [0], [0], [0, 0, 1, 0], [], []>} : vector<8x128xf32>, vector<128x128xf32>, vector<8x128xf32> -> vector<8x128xf32>
    %10 = vector.extract_strided_slice %9 {offsets = [0, 0], sizes = [1, 128], strides = [1, 1]} : vector<8x128xf32> to vector<1x128xf32>
    %c0_9 = arith.constant 0 : index
    %c0_10 = arith.constant 0 : index
    %11 = vector.load %arg5[%c0_9, %c0_10] : memref<1x1xf32, #tpu.memory_space<vmem>>, vector<1x1xf32>
    %12 = vector.broadcast %11 : vector<1x1xf32> to vector<1x128xf32>
    %13 = arith.addf %10, %12 : vector<1x128xf32>
    %c0_11 = arith.constant 0 : index
    %c0_12 = arith.constant 0 : index
    %14 = vector.load %arg6[%c0_11, %c0_12] : memref<1x128xf32, #tpu.memory_space<vmem>>, vector<1x128xf32>
    tpu.vector_store %arg6[%c0_11, %c0_12], %13 {strides = array<i32>} : memref<1x128xf32, #tpu.memory_space<vmem>>, vector<1x128xf32>,
    return
  }
  func.func @transform_0(%arg0: i32) -> (i32, i32) {
    %c0_i32 = arith.constant 0 : i32
    %c0_i32_0 = arith.constant 0 : i32
    return %arg0, %c0_i32 : i32, i32
  }
  func.func @transform_1(%arg0: i32) -> (i32, i32) {
    %c0_i32 = arith.constant 0 : i32
    %c0_i32_0 = arith.constant 0 : i32
    %c0_i32_1 = arith.constant 0 : i32
    return %c0_i32, %c0_i32_0 : i32, i32
  }
  func.func @transform_2(%arg0: i32) -> (i32, i32) {
    %c0_i32 = arith.constant 0 : i32
    %c0_i32_0 = arith.constant 0 : i32
    %c0_i32_1 = arith.constant 0 : i32
    return %c0_i32, %c0_i32_0 : i32, i32
  }
  func.func @transform_3(%arg0: i32) -> (i32, i32) {
    %c0_i32 = arith.constant 0 : i32
    %c0_i32_0 = arith.constant 0 : i32
    %c0_i32_1 = arith.constant 0 : i32
    return %c0_i32, %c0_i32_0 : i32, i32
  }
  func.func @transform_4(%arg0: i32) -> (i32, i32) {
    %c0_i32 = arith.constant 0 : i32
    %c0_i32_0 = arith.constant 0 : i32
    %c0_i32_1 = arith.constant 0 : i32
    return %c0_i32, %c0_i32_0 : i32, i32
  }
  func.func @transform_5(%arg0: i32) -> (i32, i32) {
    %c0_i32 = arith.constant 0 : i32
    %c0_i32_0 = arith.constant 0 : i32
    return %c0_i32, %arg0 : i32, i32
  }
}

</mosaic_0001>

<llo_original>
// kernel: tpu_custom_call.1
$region0: #{tpu_custom_call.1}
  #allocation0 [shape = 'u32[]', space=smem, size = 0x4, offset = 0x4, fixed_abs, tag = 'smem constant byte address 0x4 - core index']
  #allocation1 [shape = 'u32[144,128]{1,0:T(1,128)}', space=vmem, size = 0x12000, scoped, tag = 'internal scratch']
  #allocation2 [shape = 'f32[1,1]{1,0:T(1,128)S(1)}', space=vmem, size = 0x200, scoped, tag = 'scoped memory for tpu_custom_call.1']
  %s0 = inlined_call_operand.hbm [shape: f32[8,16], index: 0, kind: input, shape index: {}]
  %s1 = inlined_call_operand.hbm [shape: f32[16,128], index: 1, kind: input, shape index: {}]
  %s2 = inlined_call_operand.vmem [shape: f32[1,128], index: 2, kind: input, shape index: {}]
  %s3 = inlined_call_operand.vmem [shape: f32[8,128], index: 3, kind: input, shape index: {}]
  %s4 = inlined_call_operand.<no memory space> [shape: f32[1,1], index: 4, kind: input, shape index: {}]
  %s5 = inlined_call_operand.hbm [shape: f32[1,8], index: 5, kind: output, shape index: {}]
  %s6 = sld [smem:[#allocation0]]
  $region38: #{tpu_custom_call.1} parent=0
    _
  %s8 = ssub.s32 1, %s6
  %s9 = scalar_select 0, %s8, %s6
  %v10 = vstv %s4
  %11 = vst [vmem:[#allocation2] sm:$0x1] %v10
  $region1: #{tpu_custom_call.1} parent=0
    #allocation3 [shape = 'u8[65536]{0}', space=vmem, size = 0x10000, scoped, tag = 'input window, operand 0, single buffered']
    #allocation4 [shape = 's32[1]{0}', space=sflag, size = 0x4, scoped, tag = 'scoped memory for tpu_custom_call.1']
    #allocation5 [shape = 's32[1]{0}', space=sflag, size = 0x4, scoped, tag = 'scoped memory for tpu_custom_call.1']
    #allocation6 [shape = 'u8[8192]{0}', space=vmem, size = 0x2000, scoped, tag = 'input window, operand 1, single buffered']
    #allocation7 [shape = 's32[1]{0}', space=sflag, size = 0x4, scoped, tag = 'scoped memory for tpu_custom_call.1']
    #allocation8 [shape = 'u8[512]{0}', space=vmem, size = 0x400, scoped, tag = 'output window, operand 0, single buffered']
    %12 = vsyncpa [#allocation4], 0
    %13 = vsyncpa [#allocation7], 0
    %14 = vsyncpa [#allocation5], 0
    // Predicated region
    $region2: #{tpu_custom_call.1} parent=1 // pred_check
      _
    $region3: #{tpu_custom_call.1} parent=1 // pred_check_branch
      %16 = sbr.rel (0) target = $region5
    $region4: #{tpu_custom_call.1} parent=1 // pred_region
      %s18 = ssub.s32 2048, 128
      %19 = vsyncadd [#allocation4], %s18
      %s20 = sshll.u32 [#allocation3], 4
      %s21 = int_to_ptr.vmem [resolvable:$true] %s20
      %26 = dma.hbm_to_vmem [thread:$0]  %s0, 128, %s21, [#allocation4], 128, 128, 8
    $region5: #{tpu_custom_call.1} parent=1 // pred_fallthru
      _
    // Predicated region
    $region6: #{tpu_custom_call.1} parent=1 // pred_check
      _
    $region7: #{tpu_custom_call.1} parent=1 // pred_check_branch
      %28 = sbr.rel (0) target = $region9
    $region8: #{tpu_custom_call.1} parent=1 // pred_region
      %s30 = ssub.s32 256, 256
      %31 = vsyncadd [#allocation7], %s30
      %s32 = sshll.u32 [#allocation6], 4
      %s33 = int_to_ptr.vmem [resolvable:$true] %s32
      %38 = dma.hbm_to_vmem [thread:$0]  %s1, 256, %s33, [#allocation7], 128, 128, 8
    $region9: #{tpu_custom_call.1} parent=1 // pred_fallthru
      _
    // Predicated region
    $region10: #{tpu_custom_call.1} parent=1 // pred_check
      _
    $region11: #{tpu_custom_call.1} parent=1 // pred_check_branch
      %40 = sbr.rel (0) target = $region13
    $region12: #{tpu_custom_call.1} parent=1 // pred_region
      _
    $region13: #{tpu_custom_call.1} parent=1 // pred_fallthru
      _
    // Predicated region
    $region14: #{tpu_custom_call.1} parent=1 // pred_check
      _
    $region15: #{tpu_custom_call.1} parent=1 // pred_check_branch
      %42 = sbr.rel (0) target = $region17
    $region16: #{tpu_custom_call.1} parent=1 // pred_region
      _
    $region17: #{tpu_custom_call.1} parent=1 // pred_fallthru
      _
    // Predicated region
    $region18: #{tpu_custom_call.1} parent=1 // pred_check
      _
    $region19: #{tpu_custom_call.1} parent=1 // pred_check_branch
      %44 = sbr.rel (0) target = $region21
    $region20: #{tpu_custom_call.1} parent=1 // pred_region
      _
    $region21: #{tpu_custom_call.1} parent=1 // pred_fallthru
      _
    // Predicated region
    $region22: #{tpu_custom_call.1} parent=1 // pred_check
      _
    $region23: #{tpu_custom_call.1} parent=1 // pred_check_branch
      %46 = sbr.rel (0) target = $region25
    $region24: #{tpu_custom_call.1} parent=1 // pred_region
      %47 = dma.done [#allocation4], 2048
    $region25: #{tpu_custom_call.1} parent=1 // pred_fallthru
      _
    // Predicated region
    $region26: #{tpu_custom_call.1} parent=1 // pred_check
      _
    $region27: #{tpu_custom_call.1} parent=1 // pred_check_branch
      %49 = sbr.rel (0) target = $region29
    $region28: #{tpu_custom_call.1} parent=1 // pred_region
      %50 = dma.done [#allocation7], 256
    $region29: #{tpu_custom_call.1} parent=1 // pred_fallthru
      _
    %v51 = vld [vmem:[#allocation3] sm:$0xff]
    %v52 = vld [vmem:[#allocation3 + $0x8] sm:$0xff]
    %v53 = vld [vmem:[#allocation3 + $0x10] sm:$0xff]
    %v54 = vld [vmem:[#allocation3 + $0x18] sm:$0xff]
    %v55 = vld [vmem:[#allocation3 + $0x20] sm:$0xff]
    %v56 = vld [vmem:[#allocation3 + $0x28] sm:$0xff]
    %v57 = vld [vmem:[#allocation3 + $0x30] sm:$0xff]
    %v58 = vld [vmem:[#allocation3 + $0x38] sm:$0xff]
    %v59 = vld [vmem:[#allocation3 + $0x40] sm:$0xff]
    %v60 = vld [vmem:[#allocation3 + $0x48] sm:$0xff]
    %v61 = vld [vmem:[#allocation3 + $0x50] sm:$0xff]
    %v62 = vld [vmem:[#allocation3 + $0x58] sm:$0xff]
    %v63 = vld [vmem:[#allocation3 + $0x60] sm:$0xff]
    %v64 = vld [vmem:[#allocation3 + $0x68] sm:$0xff]
    %v65 = vld [vmem:[#allocation3 + $0x70] sm:$0xff]
    %v66 = vld [vmem:[#allocation3 + $0x78] sm:$0xff]
    %v67 = vld [vmem:[#allocation6] sm:$0xff]
    %v68 = vld [vmem:[#allocation6 + $0x8] sm:$0xff]
    %v69 = vld [vmem:[%s2] sm:$0x1]
    %v71 = vlaneseq
    %v72 = vshrl.u32 %v71, 7
    %v73 = vsub.s32 0, %v72
    %v74 = vrot.slane %v69, %v73
    %vm76 = vcmask 130048
    %v78 = vsel %vm76, %v51, 0
    %v81 = vsel %vm76, %v52, 0
    %v84 = vsel %vm76, %v53, 0
    %v87 = vsel %vm76, %v54, 0
    %v90 = vsel %vm76, %v55, 0
    %v93 = vsel %vm76, %v56, 0
    %v96 = vsel %vm76, %v57, 0
    %v99 = vsel %vm76, %v58, 0
    %v102 = vsel %vm76, %v59, 0
    %v105 = vsel %vm76, %v60, 0
    %v108 = vsel %vm76, %v61, 0
    %v111 = vsel %vm76, %v62, 0
    %v114 = vsel %vm76, %v63, 0
    %v117 = vsel %vm76, %v64, 0
    %v120 = vsel %vm76, %v65, 0
    %v123 = vsel %vm76, %v66, 0
    %125 = vmatprep.subr.mxu0 0.0
    %126 = vmatpush1.msra.mxu0 %v67
    %127 = vmatprep.subr.mxu0 0.0
    %128 = vmatpush1.msra.mxu0 %v68
    %129 = vmatprep.subr.mxu0 0.0
    %130 = vmatpush1.msra.mxu0 0.0
    %131 = vmatprep.subr.mxu0 0.0
    %132 = vmatpush1.msra.mxu0 0.0
    %133 = vmatprep.subr.mxu0 0.0
    %134 = vmatpush1.msra.mxu0 0.0
    %135 = vmatprep.subr.mxu0 0.0
    %136 = vmatpush1.msra.mxu0 0.0
    %137 = vmatprep.subr.mxu0 0.0
    %138 = vmatpush1.msra.mxu0 0.0
    %139 = vmatprep.subr.mxu0 0.0
    %140 = vmatpush1.msra.mxu0 0.0
    %141 = vmatprep.subr.mxu0 0.0
    %142 = vmatpush1.msra.mxu0 0.0
    %143 = vmatprep.subr.mxu0 0.0
    %144 = vmatpush1.msra.mxu0 0.0
    %145 = vmatprep.subr.mxu0 0.0
    %146 = vmatpush1.msra.mxu0 0.0
    %147 = vmatprep.subr.mxu0 0.0
    %148 = vmatpush1.msra.mxu0 0.0
    %149 = vmatprep.subr.mxu0 0.0
    %150 = vmatpush1.msra.mxu0 0.0
    %151 = vmatprep.subr.mxu0 0.0
    %152 = vmatpush1.msra.mxu0 0.0
    %153 = vmatprep.subr.mxu0 0.0
    %154 = vmatpush1.msra.mxu0 0.0
    %155 = vmatprep.subr.mxu0 0.0
    %156 = vmatpush1.msra.mxu0 0.0
    %157 = vmatprep.subr.mxu0 0.0
    %158 = vmatpush1.msra.mxu0 0.0
    %159 = vmatprep.subr.mxu0 0.0
    %160 = vmatpush1.msra.mxu0 0.0
    %161 = vmatprep.subr.mxu0 0.0
    %162 = vmatpush1.msra.mxu0 0.0
    %163 = vmatprep.subr.mxu0 0.0
    %164 = vmatpush1.msra.mxu0 0.0
    %165 = vmatprep.subr.mxu0 0.0
    %166 = vmatpush1.msra.mxu0 0.0
    %167 = vmatprep.subr.mxu0 0.0
    %168 = vmatpush1.msra.mxu0 0.0
    %169 = vmatprep.subr.mxu0 0.0
    %170 = vmatpush1.msra.mxu0 0.0
    %171 = vmatprep.subr.mxu0 0.0
    %172 = vmatpush1.msra.mxu0 0.0
    %173 = vmatprep.subr.mxu0 0.0
    %174 = vmatpush1.msra.mxu0 0.0
    %175 = vmatprep.subr.mxu0 0.0
    %176 = vmatpush1.msra.mxu0 0.0
    %177 = vmatprep.subr.mxu0 0.0
    %178 = vmatpush1.msra.mxu0 0.0
    %179 = vmatprep.subr.mxu0 0.0
    %180 = vmatpush1.msra.mxu0 0.0
    %181 = vmatprep.subr.mxu0 0.0
    %182 = vmatpush1.msra.mxu0 0.0
    %183 = vmatprep.subr.mxu0 0.0
    %184 = vmatpush1.msra.mxu0 0.0
    %185 = vmatprep.subr.mxu0 0.0
    %186 = vmatpush1.msra.mxu0 0.0
    %187 = vmatprep.subr.mxu0 0.0
    %188 = vmatpush1.msra.mxu0 0.0
    %189 = vmatprep.mubr.f32.mxu0 0.0
    %190 = vmatmul.mubr.f32.gmra.mrb[0].mxu0 %v78
    %v191 = vpop.f32.mrb[0].mxu0
    %v192 = vadd.f32 %v74, %v191
    %v193 = vpop.f32.mrb[0].mxu0
    %194 = vmatprep.mubr.f32.mxu0 0.0
    %195 = vmatmul.mubr.f32.gmra.mrb[0].mxu0 %v81
    %v196 = vpop.f32.mrb[0].mxu0
    %v197 = vadd.f32 %v74, %v196
    %v198 = vpop.f32.mrb[0].mxu0
    %199 = vmatprep.mubr.f32.mxu0 0.0
    %200 = vmatmul.mubr.f32.gmra.mrb[0].mxu0 %v84
    %v201 = vpop.f32.mrb[0].mxu0
    %v202 = vadd.f32 %v74, %v201
    %v203 = vpop.f32.mrb[0].mxu0
    %204 = vmatprep.mubr.f32.mxu0 0.0
    %205 = vmatmul.mubr.f32.gmra.mrb[0].mxu0 %v87
    %v206 = vpop.f32.mrb[0].mxu0
    %v207 = vadd.f32 %v74, %v206
    %v208 = vpop.f32.mrb[0].mxu0
    %209 = vmatprep.mubr.f32.mxu0 0.0
    %210 = vmatmul.mubr.f32.gmra.mrb[0].mxu0 %v90
    %v211 = vpop.f32.mrb[0].mxu0
    %v212 = vadd.f32 %v74, %v211
    %v213 = vpop.f32.mrb[0].mxu0
    %214 = vmatprep.mubr.f32.mxu0 0.0
    %215 = vmatmul.mubr.f32.gmra.mrb[0].mxu0 %v93
    %v216 = vpop.f32.mrb[0].mxu0
    %v217 = vadd.f32 %v74, %v216
    %v218 = vpop.f32.mrb[0].mxu0
    %219 = vmatprep.mubr.f32.mxu0 0.0
    %220 = vmatmul.mubr.f32.gmra.mrb[0].mxu0 %v96
    %v221 = vpop.f32.mrb[0].mxu0
    %v222 = vadd.f32 %v74, %v221
    %v223 = vpop.f32.mrb[0].mxu0
    %224 = vmatprep.mubr.f32.mxu0 0.0
    %225 = vmatmul.mubr.f32.gmra.mrb[0].mxu0 %v99
    %v226 = vpop.f32.mrb[0].mxu0
    %v227 = vadd.f32 %v74, %v226
    %v228 = vpop.f32.mrb[0].mxu0
    %229 = vmatprep.mubr.f32.mxu0 0.0
    %230 = vmatmul.mubr.f32.gmra.mrb[0].mxu0 %v102
    %v231 = vpop.f32.mrb[0].mxu0
    %v232 = vadd.f32 %v74, %v231
    %v233 = vpop.f32.mrb[0].mxu0
    %234 = vmatprep.mubr.f32.mxu0 0.0
    %235 = vmatmul.mubr.f32.gmra.mrb[0].mxu0 %v105
    %v236 = vpop.f32.mrb[0].mxu0
    %v237 = vadd.f32 %v74, %v236
    %v238 = vpop.f32.mrb[0].mxu0
    %239 = vmatprep.mubr.f32.mxu0 0.0
    %240 = vmatmul.mubr.f32.gmra.mrb[0].mxu0 %v108
    %v241 = vpop.f32.mrb[0].mxu0
    %v242 = vadd.f32 %v74, %v241
    %v243 = vpop.f32.mrb[0].mxu0
    %244 = vmatprep.mubr.f32.mxu0 0.0
    %245 = vmatmul.mubr.f32.gmra.mrb[0].mxu0 %v111
    %v246 = vpop.f32.mrb[0].mxu0
    %v247 = vadd.f32 %v74, %v246
    %v248 = vpop.f32.mrb[0].mxu0
    %249 = vmatprep.mubr.f32.mxu0 0.0
    %250 = vmatmul.mubr.f32.gmra.mrb[0].mxu0 %v114
    %v251 = vpop.f32.mrb[0].mxu0
    %v252 = vadd.f32 %v74, %v251
    %v253 = vpop.f32.mrb[0].mxu0
    %254 = vmatprep.mubr.f32.mxu0 0.0
    %255 = vmatmul.mubr.f32.gmra.mrb[0].mxu0 %v117
    %v256 = vpop.f32.mrb[0].mxu0
    %v257 = vadd.f32 %v74, %v256
    %v258 = vpop.f32.mrb[0].mxu0
    %259 = vmatprep.mubr.f32.mxu0 0.0
    %260 = vmatmul.mubr.f32.gmra.mrb[0].mxu0 %v120
    %v261 = vpop.f32.mrb[0].mxu0
    %v262 = vadd.f32 %v74, %v261
    %v263 = vpop.f32.mrb[0].mxu0
    %264 = vmatprep.mubr.f32.mxu0 0.0
    %265 = vmatmul.mubr.f32.gmra.mrb[0].mxu0 %v123
    %v266 = vpop.f32.mrb[0].mxu0
    %v267 = vadd.f32 %v74, %v266
    %v268 = vpop.f32.mrb[0].mxu0
    %269 = vdwg.mxu0
    %v270 = vmax.f32 %v192, 0.0
    %v271 = vmax.f32 %v197, 0.0
    %v272 = vmax.f32 %v202, 0.0
    %v273 = vmax.f32 %v207, 0.0
    %v274 = vmax.f32 %v212, 0.0
    %v275 = vmax.f32 %v217, 0.0
    %v276 = vmax.f32 %v222, 0.0
    %v277 = vmax.f32 %v227, 0.0
    %v278 = vmax.f32 %v232, 0.0
    %v279 = vmax.f32 %v237, 0.0
    %v280 = vmax.f32 %v242, 0.0
    %v281 = vmax.f32 %v247, 0.0
    %v282 = vmax.f32 %v252, 0.0
    %v283 = vmax.f32 %v257, 0.0
    %v284 = vmax.f32 %v262, 0.0
    %v285 = vmax.f32 %v267, 0.0
    %v286 = vld [vmem:[%s3] sm:$0xff]
    %287 = vmatprep.subr.mxu0 0.0
    %288 = vmatpush1.xpose.msra.mxu0 %v270
    %289 = vmatprep.subr.mxu0 0.0
    %290 = vmatpush1.xpose.msra.mxu0 %v271
    %291 = vmatprep.subr.mxu0 0.0
    %292 = vmatpush1.xpose.msra.mxu0 %v272
    %293 = vmatprep.subr.mxu0 0.0
    %294 = vmatpush1.xpose.msra.mxu0 %v273
    %295 = vmatprep.subr.mxu0 0.0
    %296 = vmatpush1.xpose.msra.mxu0 %v274
    %297 = vmatprep.subr.mxu0 0.0
    %298 = vmatpush1.xpose.msra.mxu0 %v275
    %299 = vmatprep.subr.mxu0 0.0
    %300 = vmatpush1.xpose.msra.mxu0 %v276
    %301 = vmatprep.subr.mxu0 0.0
    %302 = vmatpush1.xpose.msra.mxu0 %v277
    %303 = vmatprep.subr.mxu0 0.0
    %304 = vmatpush1.xpose.msra.mxu0 %v278
    %305 = vmatprep.subr.mxu0 0.0
    %306 = vmatpush1.xpose.msra.mxu0 %v279
    %307 = vmatprep.subr.mxu0 0.0
    %308 = vmatpush1.xpose.msra.mxu0 %v280
    %309 = vmatprep.subr.mxu0 0.0
    %310 = vmatpush1.xpose.msra.mxu0 %v281
    %311 = vmatprep.subr.mxu0 0.0
    %312 = vmatpush1.xpose.msra.mxu0 %v282
    %313 = vmatprep.subr.mxu0 0.0
    %314 = vmatpush1.xpose.msra.mxu0 %v283
    %315 = vmatprep.subr.mxu0 0.0
    %316 = vmatpush1.xpose.msra.mxu0 %v284
    %317 = vmatprep.subr.mxu0 0.0
    %318 = vmatpush1.xpose.msra.mxu0 %v285
    %319 = vmatprep.subr.mxu0 0.0
    %320 = vmatpush1.xpose.msra.mxu0 0.0
    %321 = vmatprep.subr.mxu0 0.0
    %322 = vmatpush1.xpose.msra.mxu0 0.0
    %323 = vmatprep.subr.mxu0 0.0
    %324 = vmatpush1.xpose.msra.mxu0 0.0
    %325 = vmatprep.subr.mxu0 0.0
    %326 = vmatpush1.xpose.msra.mxu0 0.0
    %327 = vmatprep.subr.mxu0 0.0
    %328 = vmatpush1.xpose.msra.mxu0 0.0
    %329 = vmatprep.subr.mxu0 0.0
    %330 = vmatpush1.xpose.msra.mxu0 0.0
    %331 = vmatprep.subr.mxu0 0.0
    %332 = vmatpush1.xpose.msra.mxu0 0.0
    %333 = vmatprep.subr.mxu0 0.0
    %334 = vmatpush1.xpose.msra.mxu0 0.0
    %335 = vmatprep.subr.mxu0 0.0
    %336 = vmatpush1.xpose.msra.mxu0 0.0
    %337 = vmatprep.subr.mxu0 0.0
    %338 = vmatpush1.xpose.msra.mxu0 0.0
    %339 = vmatprep.subr.mxu0 0.0
    %340 = vmatpush1.xpose.msra.mxu0 0.0
    %341 = vmatprep.subr.mxu0 0.0
    %342 = vmatpush1.xpose.msra.mxu0 0.0
    %343 = vmatprep.subr.mxu0 0.0
    %344 = vmatpush1.xpose.msra.mxu0 0.0
    %345 = vmatprep.subr.mxu0 0.0
    %346 = vmatpush1.xpose.msra.mxu0 0.0
    %347 = vmatprep.subr.mxu0 0.0
    %348 = vmatpush1.xpose.msra.mxu0 0.0
    %349 = vmatprep.subr.mxu0 0.0
    %350 = vmatpush1.xpose.msra.mxu0 0.0
    %351 = vmatprep.mubr.f32.mxu0 0.0
    %352 = vmatmul.mubr.f32.gmra.mrb[0].mxu0 %v286
    %v353 = vpop.f32.mrb[0].mxu0
    %v354 = vadd.f32 0.0, %v353
    %v355 = vpop.f32.mrb[0].mxu0
    %356 = vdwg.mxu0
    %v357 = vld [vmem:[#allocation2] sm:$0x1]
    %359 = vset.pattern.permute.xlu0 0
    %360 = vperm.xlu0 %359, %v357
    %v361 = vpop.permute.xlu0 %360
    %v363 = vlaneseq
    %v364 = vshrl.u32 %v363, 7
    %v365 = vsub.s32 0, %v364
    %v366 = vrot.slane %v361, %v365
    %v367 = vadd.f32 %v354, %v366
    %368 = vst [vmem:[#allocation8] sm:$0x1] %v367
    // Predicated region
    $region30: #{tpu_custom_call.1} parent=1 // pred_check
      _
    $region31: #{tpu_custom_call.1} parent=1 // pred_check_branch
      %370 = sbr.rel (0) target = $region33
    $region32: #{tpu_custom_call.1} parent=1 // pred_region
      %s372 = ssub.s32 16, 16
      %373 = vsyncadd [#allocation5], %s372
      %s375 = sshll.u32 [#allocation8], 4
      %s376 = int_to_ptr.vmem [resolvable:$true] %s375
      %378 = dma.vmem_to_hbm [thread:$0]  %s376, 16, %s5, [#allocation5]
    $region33: #{tpu_custom_call.1} parent=1 // pred_fallthru
      _
    // Predicated region
    $region34: #{tpu_custom_call.1} parent=1 // pred_check
      _
    $region35: #{tpu_custom_call.1} parent=1 // pred_check_branch
      %380 = sbr.rel (0) target = $region37
    $region36: #{tpu_custom_call.1} parent=1 // pred_region
      %381 = dma.done [#allocation5], 16
    $region37: #{tpu_custom_call.1} parent=1 // pred_fallthru
      _
    %382 = vsyncpa [#allocation4], 1
    %383 = vsyncpa [#allocation7], 1
    %384 = vsyncpa [#allocation5], 1

</llo_original>
